<compile_context>
chip_gen: v7x
topology: tpu7x:2x2x1
jax: 0.10.0
libtpu: 0.0.40
codegen_flags: <defaults>
</compile_context>

<pallas_src>
import functools

import numpy as np
import jax
import jax.numpy as jnp
from jax.experimental import pallas as pl
from jax.experimental.pallas import tpu as pltpu


def _round_up(n, m):
    return ((n + m - 1) // m) * m


def _soft_decode_kernel(x_ref, di_ref, out_ref, *, val_range):
    """One tile of rows: out[i] = sum_v softmax(x[i] @ di)[v] * v.

    x_ref  : VMEM (TM, bits_pad)      float32
    di_ref : VMEM (bits_pad, vr_pad)  float32  (whole table, resident)
    out_ref: VMEM (TM, 1)             float32
    """
    # MXU matmul: (TM, bits_pad) @ (bits_pad, vr_pad) -> (TM, vr_pad)
    logits = jnp.dot(x_ref[...], di_ref[...],
                     preferred_element_type=jnp.float32)

    # Mask out padded val_range columns so softmax ignores them.
    col = jax.lax.broadcasted_iota(jnp.int32, logits.shape, 1)
    neg = jnp.full_like(logits, jnp.finfo(jnp.float32).min)
    logits = jnp.where(col < val_range, logits, neg)

    # Numerically-stable softmax expectation (identical value to torch's
    # nn.Softmax followed by *arange and sum).
    m = jnp.max(logits, axis=1, keepdims=True)
    e = jnp.exp(logits - m)                                   # padded cols -> 0
    denom = jnp.sum(e, axis=1, keepdims=True)
    num = jnp.sum(e * col.astype(jnp.float32), axis=1, keepdims=True)
    out_ref[...] = num / denom


def soft_correlation_reverse_transform(x, di, *, block_rows=256):
    """Pallas equivalent of softCorrelationReverseTransform.forward.

    x : (N, bits) float  -- soft encodings.
    di: (bits, val_range) float -- correlation table (fwd.di).
    returns (N,) float32.
    """
    x = jnp.asarray(x, jnp.float32)
    di = jnp.asarray(di, jnp.float32)
    N, bits = x.shape
    bits_d, val_range = di.shape
    assert bits == bits_d, (bits, bits_d)

    bits_pad = _round_up(bits, 8)           # sublane-aligned contraction dim
    vr_pad = _round_up(val_range, 128)      # lane-aligned softmax dim
    tm = min(block_rows, _round_up(N, 8))   # big row tiles, small demos stay small
    n_pad = _round_up(N, tm)

    # TODO(synk): for a fixed model, pad `di` once at module init instead of
    # on every call (it is a constant table).
    di_p = jnp.zeros((bits_pad, vr_pad), jnp.float32).at[:bits, :val_range].set(di)
    x_p = jnp.zeros((n_pad, bits_pad), jnp.float32).at[:N, :bits].set(x)

    out = pl.pallas_call(
        functools.partial(_soft_decode_kernel, val_range=val_range),
        out_shape=jax.ShapeDtypeStruct((n_pad, 1), jnp.float32),
        grid_spec=pltpu.PrefetchScalarGridSpec(
            num_scalar_prefetch=0,
            grid=(n_pad // tm,),
            in_specs=[
                # row tile of x
                pl.BlockSpec((tm, bits_pad), lambda i: (i, 0)),
                # whole (tiny) di table resident in VMEM every step
                pl.BlockSpec((bits_pad, vr_pad), lambda i: (0, 0)),
            ],
            out_specs=pl.BlockSpec((tm, 1), lambda i: (i, 0)),
        ),
        compiler_params=pltpu.CompilerParams(
            dimension_semantics=("parallel",),   # rows independent; v7x 2-TC shard
            vmem_limit_bytes=64 << 20,
        ),
    )(x_p, di_p)

    return out[:N, 0]


if __name__ == "__main__":
    key = jax.random.PRNGKey(0)
    k1, k2 = jax.random.split(key)

    # Small shapes consistent with the module: bits=18 encoding width,
    # val_range=200 discrete values, N=16 rows.
    N, bits, val_range = 16, 18, 200
    di = jax.random.normal(k1, (bits, val_range), dtype=jnp.float32)
    x = jax.random.normal(k2, (N, bits), dtype=jnp.float32)

    out = soft_correlation_reverse_transform(x, di)
    out = jax.block_until_ready(out)

    # Reference == the torch per-row loop of soft_match_decode:
    #   softmax(x[i] @ di) dotted with arange(val_range).
    logits = x @ di
    p = jax.nn.softmax(logits, axis=1)
    ref = jnp.sum(p * jnp.arange(val_range, dtype=jnp.float32), axis=1)

    assert out.shape == (N,), out.shape
    np.testing.assert_allclose(np.asarray(out), np.asarray(ref),
                               rtol=1e-5, atol=1e-5)

    print("KERNEL_OK")
</pallas_src>

<mosaic_0001>
module attributes {stable_mosaic.version = 11 : i64} {
  func.func @_soft_decode_kernel(%arg0: i32, %arg1: memref<16x24xf32, #tpu.memory_space<vmem>>, %arg2: memref<24x256xf32, #tpu.memory_space<vmem>>, %arg3: memref<16x1xf32, #tpu.memory_space<vmem>>) attributes {dimension_semantics = [#tpu.dimension_semantics<parallel>], iteration_bounds = array<i64: 1>, scalar_prefetch = 0 : i64, scratch_operands = 0 : i64, tpu.core_type = #tpu.core_type<tc>, window_params = [{transform_indices = @transform_0, window_bounds = array<i64: 16, 24>}, {pipeline_mode = #tpu.pipeline_mode<synchronous>, transform_indices = @transform_1, window_bounds = array<i64: 24, 256>}, {transform_indices = @transform_2, window_bounds = array<i64: 16, 1>}]} {
    %c0 = arith.constant 0 : index
    %c0_0 = arith.constant 0 : index
    %0 = vector.load %arg1[%c0, %c0_0] : memref<16x24xf32, #tpu.memory_space<vmem>>, vector<16x24xf32>
    %c0_1 = arith.constant 0 : index
    %c0_2 = arith.constant 0 : index
    %1 = vector.load %arg2[%c0_1, %c0_2] : memref<24x256xf32, #tpu.memory_space<vmem>>, vector<24x256xf32>
    %cst = arith.constant dense<0.000000e+00> : vector<16x256xf32>
    %2 = tpu.matmul %0, %1, %cst {dimension_numbers = #tpu.dot_dimension_numbers<[1], [0], [0], [1], [0, 0, 1, 1], [], []>} : vector<16x24xf32>, vector<24x256xf32>, vector<16x256xf32> -> vector<16x256xf32>
    %3 = tpu.iota {dimensions = array<i32: 1>} : vector<16x256xi32>
    %cst_3 = arith.constant -3.40282347E+38 : f32
    %4 = vector.broadcast %cst_3 : f32 to vector<16x256xf32>
    %c200_i32 = arith.constant 200 : i32
    %5 = vector.broadcast %c200_i32 : i32 to vector<16x256xi32>
    %6 = arith.cmpi slt, %3, %5 : vector<16x256xi32>
    %7 = arith.select %6, %2, %4 : vector<16x256xi1>, vector<16x256xf32>
    %cst_4 = arith.constant dense<0xFF800000> : vector<16xf32>
    %8 = vector.multi_reduction <maximumf>, %7, %cst_4 [1] : vector<16x256xf32> to vector<16xf32>
    %9 = vector.shape_cast %8 : vector<16xf32> to vector<16x1xf32>
    %10 = vector.broadcast %9 : vector<16x1xf32> to vector<16x256xf32>
    %11 = arith.subf %7, %10 : vector<16x256xf32>
    %12 = math.exp %11 : vector<16x256xf32>
    %cst_5 = arith.constant dense<0.000000e+00> : vector<16xf32>
    %13 = vector.multi_reduction <add>, %12, %cst_5 [1] : vector<16x256xf32> to vector<16xf32>
    %14 = vector.shape_cast %13 : vector<16xf32> to vector<16x1xf32>
    %15 = arith.sitofp %3 : vector<16x256xi32> to vector<16x256xf32>
    %16 = arith.mulf %12, %15 : vector<16x256xf32>
    %cst_6 = arith.constant dense<0.000000e+00> : vector<16xf32>
    %17 = vector.multi_reduction <add>, %16, %cst_6 [1] : vector<16x256xf32> to vector<16xf32>
    %18 = vector.shape_cast %17 : vector<16xf32> to vector<16x1xf32>
    %19 = arith.divf %18, %14 : vector<16x1xf32>
    %c0_7 = arith.constant 0 : index
    %c0_8 = arith.constant 0 : index
    %20 = vector.load %arg3[%c0_7, %c0_8] : memref<16x1xf32, #tpu.memory_space<vmem>>, vector<16x1xf32>
    tpu.vector_store %arg3[%c0_7, %c0_8], %19 {strides = array<i32>} : memref<16x1xf32, #tpu.memory_space<vmem>>, vector<16x1xf32>,
    return
  }
  func.func @transform_0(%arg0: i32) -> (i32, i32) {
    %c0_i32 = arith.constant 0 : i32
    %c0_i32_0 = arith.constant 0 : i32
    return %arg0, %c0_i32 : i32, i32
  }
  func.func @transform_1(%arg0: i32) -> (i32, i32) {
    %c0_i32 = arith.constant 0 : i32
    %c0_i32_0 = arith.constant 0 : i32
    %c0_i32_1 = arith.constant 0 : i32
    return %c0_i32, %c0_i32_0 : i32, i32
  }
  func.func @transform_2(%arg0: i32) -> (i32, i32) {
    %c0_i32 = arith.constant 0 : i32
    %c0_i32_0 = arith.constant 0 : i32
    return %arg0, %c0_i32 : i32, i32
  }
}

</mosaic_0001>

<llo_original>
// kernel: tpu_custom_call.1
$region0: #{tpu_custom_call.1}
  #allocation0 [shape = 'u32[]', space=smem, size = 0x4, offset = 0x4, fixed_abs, tag = 'smem constant byte address 0x4 - core index']
  #allocation1 [shape = 'u32[144,128]{1,0:T(1,128)}', space=vmem, size = 0x12000, scoped, tag = 'internal scratch']
  %s0 = inlined_call_operand.hbm [shape: f32[16,24], index: 0, kind: input, shape index: {}]
  %s1 = inlined_call_operand.hbm [shape: f32[24,256], index: 1, kind: input, shape index: {}]
  %s2 = inlined_call_operand.hbm [shape: f32[16,1], index: 2, kind: output, shape index: {}]
  %s3 = sld [smem:[#allocation0]]
  $region26: #{tpu_custom_call.1} parent=0
    _
  %s5 = ssub.s32 1, %s3
  %s6 = scalar_select 0, %s5, %s3
  $region1: #{tpu_custom_call.1} parent=0
    #allocation2 [shape = 'u8[8192]{0}', space=vmem, size = 0x2000, scoped, tag = 'input window, operand 0, single buffered']
    #allocation3 [shape = 's32[1]{0}', space=sflag, size = 0x4, scoped, tag = 'scoped memory for tpu_custom_call.1']
    #allocation4 [shape = 's32[1]{0}', space=sflag, size = 0x4, scoped, tag = 'scoped memory for tpu_custom_call.1']
    #allocation5 [shape = 'u8[24576]{0}', space=vmem, size = 0x6000, scoped, tag = 'input window, operand 1, single buffered']
    #allocation6 [shape = 's32[1]{0}', space=sflag, size = 0x4, scoped, tag = 'scoped memory for tpu_custom_call.1']
    #allocation7 [shape = 'u8[8192]{0}', space=vmem, size = 0x2000, scoped, tag = 'output window, operand 0, single buffered']
    %7 = vsyncpa [#allocation3], 0
    %8 = vsyncpa [#allocation6], 0
    %9 = vsyncpa [#allocation4], 0
    // Predicated region
    $region2: #{tpu_custom_call.1} parent=1 // pred_check
      _
    $region3: #{tpu_custom_call.1} parent=1 // pred_check_branch
      %11 = sbr.rel (0) target = $region5
    $region4: #{tpu_custom_call.1} parent=1 // pred_region
      %s13 = ssub.s32 256, 256
      %14 = vsyncadd [#allocation3], %s13
      %s15 = sshll.u32 [#allocation2], 4
      %s16 = int_to_ptr.vmem [resolvable:$true] %s15
      %21 = dma.hbm_to_vmem [thread:$0]  %s0, 256, %s16, [#allocation3], 128, 128, 8
    $region5: #{tpu_custom_call.1} parent=1 // pred_fallthru
      _
    // Predicated region
    $region6: #{tpu_custom_call.1} parent=1 // pred_check
      _
    $region7: #{tpu_custom_call.1} parent=1 // pred_check_branch
      %23 = sbr.rel (0) target = $region9
    $region8: #{tpu_custom_call.1} parent=1 // pred_region
      %s25 = ssub.s32 768, 768
      %26 = vsyncadd [#allocation6], %s25
      %s27 = sshll.u32 [#allocation5], 4
      %s28 = int_to_ptr.vmem [resolvable:$true] %s27
      %33 = dma.hbm_to_vmem [thread:$0]  %s1, 768, %s28, [#allocation6], 256, 256, 16
    $region9: #{tpu_custom_call.1} parent=1 // pred_fallthru
      _
    // Predicated region
    $region10: #{tpu_custom_call.1} parent=1 // pred_check
      _
    $region11: #{tpu_custom_call.1} parent=1 // pred_check_branch
      %35 = sbr.rel (0) target = $region13
    $region12: #{tpu_custom_call.1} parent=1 // pred_region
      %36 = dma.done [#allocation3], 256
    $region13: #{tpu_custom_call.1} parent=1 // pred_fallthru
      _
    // Predicated region
    $region14: #{tpu_custom_call.1} parent=1 // pred_check
      _
    $region15: #{tpu_custom_call.1} parent=1 // pred_check_branch
      %38 = sbr.rel (0) target = $region17
    $region16: #{tpu_custom_call.1} parent=1 // pred_region
      %39 = dma.done [#allocation6], 768
    $region17: #{tpu_custom_call.1} parent=1 // pred_fallthru
      _
    %v40 = vld [vmem:[#allocation2] sm:$0xff]
    %v41 = vld [vmem:[#allocation2 + $0x8] sm:$0xff]
    %v42 = vld [vmem:[#allocation5] sm:$0xff]
    %v43 = vld [vmem:[#allocation5 + $0x8] sm:$0xff]
    %v44 = vld [vmem:[#allocation5 + $0x10] sm:$0xff]
    %v45 = vld [vmem:[#allocation5 + $0x18] sm:$0xff]
    %v46 = vld [vmem:[#allocation5 + $0x20] sm:$0xff]
    %v47 = vld [vmem:[#allocation5 + $0x28] sm:$0xff]
    %vm48 = vcmask 195584
    %v50 = vsel %vm48, %v40, 0
    %v53 = vsel %vm48, %v41, 0
    %55 = vmatprep.subr.mxu0 %v43
    %56 = vmatpush1.msra.mxu0 %v42
    %57 = vmatprep.subr.mxu0 %v45
    %58 = vmatpush1.msra.mxu0 %v44
    %59 = vmatprep.subr.mxu0 %v47
    %60 = vmatpush1.msra.mxu0 %v46
    %61 = vmatprep.subr.mxu0 0.0
    %62 = vmatpush1.msra.mxu0 0.0
    %63 = vmatprep.subr.mxu0 0.0
    %64 = vmatpush1.msra.mxu0 0.0
    %65 = vmatprep.subr.mxu0 0.0
    %66 = vmatpush1.msra.mxu0 0.0
    %67 = vmatprep.subr.mxu0 0.0
    %68 = vmatpush1.msra.mxu0 0.0
    %69 = vmatprep.subr.mxu0 0.0
    %70 = vmatpush1.msra.mxu0 0.0
    %71 = vmatprep.subr.mxu0 0.0
    %72 = vmatpush1.msra.mxu0 0.0
    %73 = vmatprep.subr.mxu0 0.0
    %74 = vmatpush1.msra.mxu0 0.0
    %75 = vmatprep.subr.mxu0 0.0
    %76 = vmatpush1.msra.mxu0 0.0
    %77 = vmatprep.subr.mxu0 0.0
    %78 = vmatpush1.msra.mxu0 0.0
    %79 = vmatprep.subr.mxu0 0.0
    %80 = vmatpush1.msra.mxu0 0.0
    %81 = vmatprep.subr.mxu0 0.0
    %82 = vmatpush1.msra.mxu0 0.0
    %83 = vmatprep.subr.mxu0 0.0
    %84 = vmatpush1.msra.mxu0 0.0
    %85 = vmatprep.subr.mxu0 0.0
    %86 = vmatpush1.msra.mxu0 0.0
    %87 = vmatprep.subr.mxu0 0.0
    %88 = vmatpush1.msra.mxu0 0.0
    %89 = vmatprep.subr.mxu0 0.0
    %90 = vmatpush1.msra.mxu0 0.0
    %91 = vmatprep.subr.mxu0 0.0
    %92 = vmatpush1.msra.mxu0 0.0
    %93 = vmatprep.subr.mxu0 0.0
    %94 = vmatpush1.msra.mxu0 0.0
    %95 = vmatprep.subr.mxu0 0.0
    %96 = vmatpush1.msra.mxu0 0.0
    %97 = vmatprep.subr.mxu0 0.0
    %98 = vmatpush1.msra.mxu0 0.0
    %99 = vmatprep.subr.mxu0 0.0
    %100 = vmatpush1.msra.mxu0 0.0
    %101 = vmatprep.subr.mxu0 0.0
    %102 = vmatpush1.msra.mxu0 0.0
    %103 = vmatprep.subr.mxu0 0.0
    %104 = vmatpush1.msra.mxu0 0.0
    %105 = vmatprep.subr.mxu0 0.0
    %106 = vmatpush1.msra.mxu0 0.0
    %107 = vmatprep.subr.mxu0 0.0
    %108 = vmatpush1.msra.mxu0 0.0
    %109 = vmatprep.subr.mxu0 0.0
    %110 = vmatpush1.msra.mxu0 0.0
    %111 = vmatprep.subr.mxu0 0.0
    %112 = vmatpush1.msra.mxu0 0.0
    %113 = vmatprep.subr.mxu0 0.0
    %114 = vmatpush1.msra.mxu0 0.0
    %115 = vmatprep.subr.mxu0 0.0
    %116 = vmatpush1.msra.mxu0 0.0
    %117 = vmatprep.subr.mxu0 0.0
    %118 = vmatpush1.msra.mxu0 0.0
    %119 = vmatprep.mubr.f32.mxu0 0.0
    %120 = vmatmul.mubr.f32.gmra.mrb[0].mxu0 %v50
    %v121 = vpop.f32.mrb[0].mxu0
    %v122 = vadd.f32 0.0, %v121
    %v123 = vpop.f32.mrb[0].mxu0
    %v124 = vadd.f32 0.0, %v123
    %125 = vmatprep.mubr.f32.mxu0 0.0
    %126 = vmatmul.mubr.f32.gmra.mrb[0].mxu0 %v53
    %v127 = vpop.f32.mrb[0].mxu0
    %v128 = vadd.f32 0.0, %v127
    %v129 = vpop.f32.mrb[0].mxu0
    %v130 = vadd.f32 0.0, %v129
    %131 = vdwg.mxu0
    %v132 = vlaneseq
    %v133 = vand.u32 %v132, 127
    %v134 = vadd.s32 %v133, 128
    %vm135 = vcmp.lt.s32.totalorder %v133, 200
    %vm136 = vcmp.lt.s32.totalorder %v134, 200
    %v137 = vsel %vm135, %v122, -3.4028235e+38
    %v138 = vsel %vm136, %v124, -3.4028235e+38
    %v139 = vsel %vm135, %v128, -3.4028235e+38
    %v140 = vsel %vm136, %v130, -3.4028235e+38
    %v141 = vmax.f32 %v137, %v138
    %142 = vmax.xlane.f32.xlu0 %v141
    %v143 = vpop.xlane.xlu0 %142
    %v144 = vmax.f32 %v139, %v140
    %145 = vmax.xlane.f32.xlu0 %v144
    %v146 = vpop.xlane.xlu0 %145
    %v147 = vsub.f32 %v137, %v143
    %v148 = vsub.f32 %v138, %v143
    %v149 = vsub.f32 %v139, %v146
    %v150 = vsub.f32 %v140, %v146
    %v151 = vmul.f32 %v147, 1.442695
    %v152 = vpow.pop %v151
    %v153 = vmul.f32 %v148, 1.442695
    %v154 = vpow.pop %v153
    %v155 = vmul.f32 %v149, 1.442695
    %v156 = vpow.pop %v155
    %v157 = vmul.f32 %v150, 1.442695
    %v158 = vpow.pop %v157
    %v159 = vadd.f32 %v152, %v154
    %160 = vadd.xlane.f32.xlu0 %v159
    %v161 = vpop.xlane.xlu0 %160
    %v162 = vadd.f32 %v156, %v158
    %163 = vadd.xlane.f32.xlu0 %v162
    %v164 = vpop.xlane.xlu0 %163
    %v165 = vcvt.s32.f32 %v133
    %v166 = vcvt.s32.f32 %v134
    %v167 = vmul.f32 %v152, %v165
    %v168 = vmul.f32 %v154, %v166
    %v169 = vmul.f32 %v156, %v165
    %v170 = vmul.f32 %v158, %v166
    %v171 = vadd.f32 %v167, %v168
    %172 = vadd.xlane.f32.xlu0 %v171
    %v173 = vpop.xlane.xlu0 %172
    %v174 = vadd.f32 %v169, %v170
    %175 = vadd.xlane.f32.xlu0 %v174
    %v176 = vpop.xlane.xlu0 %175
    %v177 = vrcp.pop %v161
    %v178 = vmul.f32 %v173, %v177
    %v179 = vrcp.pop %v164
    %v180 = vmul.f32 %v176, %v179
    %vm181 = vcmask 7168
    %182 = vst.msk [vmem:[#allocation7] sm:$0xff] %vm181, %v178
    %183 = vst.msk [vmem:[#allocation7 + $0x8] sm:$0xff] %vm181, %v180
    // Predicated region
    $region18: #{tpu_custom_call.1} parent=1 // pred_check
      _
    $region19: #{tpu_custom_call.1} parent=1 // pred_check_branch
      %185 = sbr.rel (0) target = $region21
    $region20: #{tpu_custom_call.1} parent=1 // pred_region
      %s187 = ssub.s32 256, 256
      %188 = vsyncadd [#allocation4], %s187
      %s189 = sshll.u32 [#allocation7], 4
      %s190 = int_to_ptr.vmem [resolvable:$true] %s189
      %195 = dma.vmem_to_hbm [thread:$0]  %s190, 256, %s2, [#allocation4], 128, 128, 8
    $region21: #{tpu_custom_call.1} parent=1 // pred_fallthru
      _
    // Predicated region
    $region22: #{tpu_custom_call.1} parent=1 // pred_check
      _
    $region23: #{tpu_custom_call.1} parent=1 // pred_check_branch
      %197 = sbr.rel (0) target = $region25
    $region24: #{tpu_custom_call.1} parent=1 // pred_region
      %198 = dma.done [#allocation4], 256
    $region25: #{tpu_custom_call.1} parent=1 // pred_fallthru
      _
    %199 = vsyncpa [#allocation3], 1
    %200 = vsyncpa [#allocation6], 1
    %201 = vsyncpa [#allocation4], 1

</llo_original>
